<compile_context>
chip_gen: v7x
topology: tpu7x:2x2x1
jax: 0.10.0
libtpu: 0.0.40
codegen_flags: <defaults>
</compile_context>

<pallas_src>
import jax
import jax.numpy as jnp
from jax.experimental import pallas as pl
from jax.experimental.pallas import tpu as pltpu

_LANE = 128
_SUB = 8


def _round_up(a, m):
    return ((a + m - 1) // m) * m


def _make_linear_svm_kernel(nk, tk, rem):
    """nk: # K tiles, tk: K tile size, rem: valid cols in last K tile (0 = full)."""

    def kernel(x_ref, w_ref, b_ref, o_ref, acc_ref):
        # x_ref: (TB, TK) VMEM (streamed), w_ref: (TK, 1) VMEM (resident column),
        # b_ref: (1, 1) SMEM scalar, o_ref: (TB, 1) output block,
        # acc_ref: (TB, 1) f32 accumulator scratch.
        k = pl.program_id(1)

        @pl.when(k == 0)
        def _init():
            acc_ref[...] = jnp.zeros_like(acc_ref)

        x = x_ref[...]
        if rem:  # static: only traced when D % TK != 0 and nk > 1
            # Zero the garbage feature columns of the ragged last K block so
            # they cannot contaminate the accumulation (weight is zero-padded
            # wrapper-side, so masked cols contribute exactly 0).
            col = jax.lax.broadcasted_iota(jnp.int32, x.shape, 1)
            limit = jnp.where(k == nk - 1, jnp.int32(rem), jnp.int32(tk))
            x = jnp.where(col < limit, x, jnp.zeros_like(x))

        acc_ref[...] += jnp.dot(x, w_ref[...], preferred_element_type=jnp.float32)

        @pl.when(k == nk - 1)
        def _finalize():
            o_ref[...] = (acc_ref[...] + b_ref[0, 0]).astype(o_ref.dtype)

    return kernel


def linear_svm_forward(x, weight, bias, *, target_tile_bytes=8 << 20,
                       row_vmem_budget_bytes=24 << 20):
    """x: (B, D); weight: (1, D) (PyTorch nn.Linear layout); bias: (1,).
    Returns (B,), matching `self.linear(x).squeeze(1)`."""
    B, D = x.shape
    itemsize = jnp.dtype(x.dtype).itemsize

    # ---- K (input_dim) tiling: one K tile when the lane-padded row is small
    # enough to keep >=1024 batch rows per x tile; otherwise split K. ----
    k_pad_full = _round_up(D, _LANE)
    if k_pad_full * itemsize * 1024 <= target_tile_bytes:
        tk, nk, tk_pad = D, 1, k_pad_full
    else:
        tk = max(_LANE, (target_tile_bytes // (1024 * itemsize)) // _LANE * _LANE)
        nk = pl.cdiv(D, tk)
        tk_pad = tk
    rem = (D % tk) if nk > 1 else 0

    # ---- Batch tile: sized from the lane-padded VMEM footprint of everything
    # scaling with TB (x double-buffer + (TB,1) out double-buffer + f32 acc). ----
    per_row = (2 * tk_pad * itemsize        # x, double-buffered
               + 2 * _LANE * itemsize       # (TB,1) output block (lane-padded), x2
               + _LANE * 4)                 # (TB,1) f32 accumulator scratch
    rows = max(_SUB, row_vmem_budget_bytes // per_row)
    tb = (rows // _LANE) * _LANE
    if tb == 0:
        tb = max(_SUB, (rows // _SUB) * _SUB)
    tb = min(tb, _round_up(B, _SUB))        # never over-tile a small batch
    if B >= 2 * _LANE and pl.cdiv(B, tb) < 2:
        tb = _round_up(pl.cdiv(B, 2), _SUB)  # >= 2 batch tiles -> v7x megacore busy
    nb = pl.cdiv(B, tb)

    # ---- Parameters (tiny; padding the weight column costs D floats, not x). ----
    k_total = nk * tk
    w_col = weight.reshape(D, 1).astype(x.dtype)
    if k_total != D:
        w_col = jnp.pad(w_col, ((0, k_total - D), (0, 0)))
    b = bias.reshape(1, 1).astype(jnp.float32)

    # ---- VMEM limit from actual (lane-padded) footprint + headroom. ----
    vmem_bytes = (2 * tb * tk_pad * itemsize
                  + 2 * tb * _LANE * itemsize
                  + tb * _LANE * 4
                  + 2 * _round_up(tk, _SUB) * _LANE * itemsize)
    vmem_limit = int(min(56 << 20, max(32 << 20, vmem_bytes + (8 << 20))))

    out = pl.pallas_call(
        _make_linear_svm_kernel(nk, tk, rem),
        out_shape=jax.ShapeDtypeStruct((B, 1), x.dtype),
        grid_spec=pltpu.PrefetchScalarGridSpec(
            num_scalar_prefetch=0,
            grid=(nb, nk),
            in_specs=[
                pl.BlockSpec((tb, tk), lambda i, k: (i, k)),            # stream x
                pl.BlockSpec((tk, 1), lambda i, k: (k, 0)),             # weight col
                pl.BlockSpec(memory_space=pltpu.MemorySpace.SMEM),      # bias scalar
            ],
            out_specs=pl.BlockSpec((tb, 1), lambda i, k: (i, 0)),
            scratch_shapes=[pltpu.VMEM((tb, 1), jnp.float32)],
        ),
        compiler_params=pltpu.CompilerParams(
            dimension_semantics=("parallel", "arbitrary"),
            vmem_limit_bytes=vmem_limit,
        ),
        cost_estimate=pl.CostEstimate(
            flops=2 * B * D,
            transcendentals=0,
            bytes_accessed=itemsize * (B * D + D + B),
        ),
    )(x, w_col, b)

    return out[:, 0]   # squeeze(1)


if __name__ == "__main__":
    key = jax.random.PRNGKey(0)
    B, D = 8, 32

    kx, kw, kb = jax.random.split(key, 3)
    x = jax.random.normal(kx, (B, D), dtype=jnp.float32)
    # Deterministic param init (mimics nn.Linear's uniform(-1/sqrt(D), 1/sqrt(D)))
    bound = 1.0 / jnp.sqrt(jnp.float32(D))
    weight = jax.random.uniform(kw, (1, D), minval=-bound, maxval=bound,
                                dtype=jnp.float32)
    bias = jax.random.uniform(kb, (1,), minval=-bound, maxval=bound,
                              dtype=jnp.float32)

    y = linear_svm_forward(x, weight, bias)
    jax.block_until_ready(y)

    # Reference check in plain JAX
    y_ref = (x @ weight.T + bias)[:, 0]
    assert y.shape == (B,)
    assert jnp.allclose(y, y_ref, atol=1e-5, rtol=1e-5)

    print("KERNEL_OK")
</pallas_src>

<mosaic_0001>
module attributes {stable_mosaic.version = 11 : i64} {
  func.func @kernel(%arg0: i32, %arg1: i32, %arg2: memref<8x32xf32, #tpu.memory_space<vmem>>, %arg3: memref<32x1xf32, #tpu.memory_space<vmem>>, %arg4: memref<1x1xf32, #tpu.memory_space<smem>>, %arg5: memref<8x1xf32, #tpu.memory_space<vmem>>, %arg6: memref<8x1xf32, #tpu.memory_space<vmem>>) attributes {dimension_semantics = [#tpu.dimension_semantics<parallel>, #tpu.dimension_semantics<arbitrary>], iteration_bounds = array<i64: 1, 1>, scalar_prefetch = 0 : i64, scratch_operands = 1 : i64, tpu.core_type = #tpu.core_type<tc>, window_params = [{transform_indices = @transform_0, window_bounds = array<i64: 8, 32>}, {transform_indices = @transform_1, window_bounds = array<i64: 32, 1>}, {transform_indices = @transform_2, window_bounds = array<i64: 1, 1>}, {transform_indices = @transform_3, window_bounds = array<i64: 8, 1>}]} {
    %c0_i32 = arith.constant 0 : i32
    %0 = arith.cmpi eq, %arg1, %c0_i32 : i32
    %1 = arith.extui %0 : i1 to i32
    %c0_i32_0 = arith.constant 0 : i32
    %2 = arith.cmpi ne, %1, %c0_i32_0 : i32
    scf.if %2 {
      %cst_10 = arith.constant 0.000000e+00 : f32
      %12 = vector.broadcast %cst_10 : f32 to vector<8x1xf32>
      %c0_11 = arith.constant 0 : index
      %c0_12 = arith.constant 0 : index
      %13 = vector.load %arg6[%c0_11, %c0_12] : memref<8x1xf32, #tpu.memory_space<vmem>>, vector<8x1xf32>
      tpu.vector_store %arg6[%c0_11, %c0_12], %12 {strides = array<i32>} : memref<8x1xf32, #tpu.memory_space<vmem>>, vector<8x1xf32>,
    } else {
    }
    %c0 = arith.constant 0 : index
    %c0_1 = arith.constant 0 : index
    %3 = vector.load %arg2[%c0, %c0_1] : memref<8x32xf32, #tpu.memory_space<vmem>>, vector<8x32xf32>
    %c0_2 = arith.constant 0 : index
    %c0_3 = arith.constant 0 : index
    %4 = vector.load %arg6[%c0_2, %c0_3] : memref<8x1xf32, #tpu.memory_space<vmem>>, vector<8x1xf32>
    %c0_4 = arith.constant 0 : index
    %c0_5 = arith.constant 0 : index
    %5 = vector.load %arg3[%c0_4, %c0_5] : memref<32x1xf32, #tpu.memory_space<vmem>>, vector<32x1xf32>
    %cst = arith.constant dense<0.000000e+00> : vector<8x1xf32>
    %6 = tpu.matmul %3, %5, %cst {dimension_numbers = #tpu.dot_dimension_numbers<[1], [0], [0], [1], [0, 0, 1, 1], [], []>} : vector<8x32xf32>, vector<32x1xf32>, vector<8x1xf32> -> vector<8x1xf32>
    %7 = arith.addf %4, %6 : vector<8x1xf32>
    %c0_6 = arith.constant 0 : index
    %c0_7 = arith.constant 0 : index
    %8 = vector.load %arg6[%c0_6, %c0_7] : memref<8x1xf32, #tpu.memory_space<vmem>>, vector<8x1xf32>
    tpu.vector_store %arg6[%c0_6, %c0_7], %7 {strides = array<i32>} : memref<8x1xf32, #tpu.memory_space<vmem>>, vector<8x1xf32>,
    %c0_i32_8 = arith.constant 0 : i32
    %9 = arith.cmpi eq, %arg1, %c0_i32_8 : i32
    %10 = arith.extui %9 : i1 to i32
    %c0_i32_9 = arith.constant 0 : i32
    %11 = arith.cmpi ne, %10, %c0_i32_9 : i32
    scf.if %11 {
      %c0_10 = arith.constant 0 : index
      %c0_11 = arith.constant 0 : index
      %12 = vector.load %arg6[%c0_10, %c0_11] : memref<8x1xf32, #tpu.memory_space<vmem>>, vector<8x1xf32>
      %c0_12 = arith.constant 0 : index
      %c0_13 = arith.constant 0 : index
      %13 = memref.load %arg4[%c0_12, %c0_13] : memref<1x1xf32, #tpu.memory_space<smem>>
      %14 = vector.broadcast %13 : f32 to vector<8x1xf32>
      %15 = arith.addf %12, %14 : vector<8x1xf32>
      %c0_14 = arith.constant 0 : index
      %c0_15 = arith.constant 0 : index
      %16 = vector.load %arg5[%c0_14, %c0_15] : memref<8x1xf32, #tpu.memory_space<vmem>>, vector<8x1xf32>
      tpu.vector_store %arg5[%c0_14, %c0_15], %15 {strides = array<i32>} : memref<8x1xf32, #tpu.memory_space<vmem>>, vector<8x1xf32>,
    } else {
    }
    return
  }
  func.func @transform_0(%arg0: i32, %arg1: i32) -> (i32, i32) {
    %c0_i32 = arith.constant 0 : i32
    return %arg0, %arg1 : i32, i32
  }
  func.func @transform_1(%arg0: i32, %arg1: i32) -> (i32, i32) {
    %c0_i32 = arith.constant 0 : i32
    %c0_i32_0 = arith.constant 0 : i32
    return %arg1, %c0_i32 : i32, i32
  }
  func.func @transform_2(%arg0: i32, %arg1: i32) -> (i32, i32) {
    %c0_i32 = arith.constant 0 : i32
    %c0_i32_0 = arith.constant 0 : i32
    %c0_i32_1 = arith.constant 0 : i32
    return %c0_i32, %c0_i32_0 : i32, i32
  }
  func.func @transform_3(%arg0: i32, %arg1: i32) -> (i32, i32) {
    %c0_i32 = arith.constant 0 : i32
    %c0_i32_0 = arith.constant 0 : i32
    return %arg0, %c0_i32 : i32, i32
  }
}

</mosaic_0001>

<llo_original>
// kernel: tpu_custom_call.1
$region0: #{tpu_custom_call.1}
  #allocation0 [shape = 'u32[]', space=smem, size = 0x4, offset = 0x4, fixed_abs, tag = 'smem constant byte address 0x4 - core index']
  #allocation1 [shape = 'u32[144,128]{1,0:T(1,128)}', space=vmem, size = 0x12000, scoped, tag = 'internal scratch']
  #allocation2 [shape = 'f32[8,1]{1,0:T(8,128)}', space=vmem, size = 0x1000, scoped, tag = 'scratch operand']
  #allocation3 [shape = 'f32[1,1]{1,0:T(1,128)S(6)}', space=smem, size = 0x200, scoped, tag = 'scoped memory for tpu_custom_call.1']
  %s0 = inlined_call_operand.vmem [shape: f32[8,32], index: 0, kind: input, shape index: {}]
  %s1 = inlined_call_operand.vmem [shape: f32[32,1], index: 1, kind: input, shape index: {}]
  %s2 = inlined_call_operand.<no memory space> [shape: f32[1,1], index: 2, kind: input, shape index: {}]
  %s3 = inlined_call_operand.vmem [shape: f32[8,1], index: 3, kind: output, shape index: {}]
  %s4 = sld [smem:[#allocation0]]
  $region30: #{tpu_custom_call.1} parent=0
    _
  %s6 = ssub.s32 1, %s4
  %s7 = scalar_select 0, %s6, %s4
  %8 = sst [smem:[#allocation3]] %s2
  // Predicated region
  $region2: #{tpu_custom_call.1} parent=0 // pred_check
    _
  $region3: #{tpu_custom_call.1} parent=0 // pred_check_branch
    %10 = sbr.rel (0) target = $region5
  $region4: #{tpu_custom_call.1} parent=0 // pred_region
    _
  $region5: #{tpu_custom_call.1} parent=0 // pred_fallthru
    _
  // Predicated region
  $region6: #{tpu_custom_call.1} parent=0 // pred_check
    _
  $region7: #{tpu_custom_call.1} parent=0 // pred_check_branch
    %12 = sbr.rel (0) target = $region9
  $region8: #{tpu_custom_call.1} parent=0 // pred_region
    _
  $region9: #{tpu_custom_call.1} parent=0 // pred_fallthru
    _
  // Predicated region
  $region10: #{tpu_custom_call.1} parent=0 // pred_check
    _
  $region11: #{tpu_custom_call.1} parent=0 // pred_check_branch
    %14 = sbr.rel (0) target = $region13
  $region12: #{tpu_custom_call.1} parent=0 // pred_region
    _
  $region13: #{tpu_custom_call.1} parent=0 // pred_fallthru
    _
  %p15 = scmp.eq.s32.totalorder 0, 0
  // Predicated region
  $region14: #{tpu_custom_call.1} parent=0 // pred_check
    %p16 = pneg %p15
  $region15: #{tpu_custom_call.1} parent=0 // pred_check_branch
    %18 = sbr.rel (%p16) target = $region17
  $region16: #{tpu_custom_call.1} parent=0 // pred_region
    %vm19 = vcmask 7168
    %20 = vst.msk [vmem:[#allocation2] sm:$0xff] %vm19, 0.0
  $region17: #{tpu_custom_call.1} parent=0 // pred_fallthru
    _
  %v21 = vld [vmem:[%s0] sm:$0xff]
  %v22 = vld [vmem:[#allocation2] sm:$0xff]
  %v23 = vld [vmem:[%s1] sm:$0xff]
  %v24 = vld [vmem:[%s1 + $0x8] sm:$0xff]
  %v25 = vld [vmem:[%s1 + $0x10] sm:$0xff]
  %v26 = vld [vmem:[%s1 + $0x18] sm:$0xff]
  %vm27 = vcmask 261120
  %v29 = vsel %vm27, %v21, 0
  %31 = vmatprep.subr.mxu0 0.0
  %32 = vmatpush1.msra.mxu0 %v23
  %33 = vmatprep.subr.mxu0 0.0
  %34 = vmatpush1.msra.mxu0 %v24
  %35 = vmatprep.subr.mxu0 0.0
  %36 = vmatpush1.msra.mxu0 %v25
  %37 = vmatprep.subr.mxu0 0.0
  %38 = vmatpush1.msra.mxu0 %v26
  %39 = vmatprep.subr.mxu0 0.0
  %40 = vmatpush1.msra.mxu0 0.0
  %41 = vmatprep.subr.mxu0 0.0
  %42 = vmatpush1.msra.mxu0 0.0
  %43 = vmatprep.subr.mxu0 0.0
  %44 = vmatpush1.msra.mxu0 0.0
  %45 = vmatprep.subr.mxu0 0.0
  %46 = vmatpush1.msra.mxu0 0.0
  %47 = vmatprep.subr.mxu0 0.0
  %48 = vmatpush1.msra.mxu0 0.0
  %49 = vmatprep.subr.mxu0 0.0
  %50 = vmatpush1.msra.mxu0 0.0
  %51 = vmatprep.subr.mxu0 0.0
  %52 = vmatpush1.msra.mxu0 0.0
  %53 = vmatprep.subr.mxu0 0.0
  %54 = vmatpush1.msra.mxu0 0.0
  %55 = vmatprep.subr.mxu0 0.0
  %56 = vmatpush1.msra.mxu0 0.0
  %57 = vmatprep.subr.mxu0 0.0
  %58 = vmatpush1.msra.mxu0 0.0
  %59 = vmatprep.subr.mxu0 0.0
  %60 = vmatpush1.msra.mxu0 0.0
  %61 = vmatprep.subr.mxu0 0.0
  %62 = vmatpush1.msra.mxu0 0.0
  %63 = vmatprep.subr.mxu0 0.0
  %64 = vmatpush1.msra.mxu0 0.0
  %65 = vmatprep.subr.mxu0 0.0
  %66 = vmatpush1.msra.mxu0 0.0
  %67 = vmatprep.subr.mxu0 0.0
  %68 = vmatpush1.msra.mxu0 0.0
  %69 = vmatprep.subr.mxu0 0.0
  %70 = vmatpush1.msra.mxu0 0.0
  %71 = vmatprep.subr.mxu0 0.0
  %72 = vmatpush1.msra.mxu0 0.0
  %73 = vmatprep.subr.mxu0 0.0
  %74 = vmatpush1.msra.mxu0 0.0
  %75 = vmatprep.subr.mxu0 0.0
  %76 = vmatpush1.msra.mxu0 0.0
  %77 = vmatprep.subr.mxu0 0.0
  %78 = vmatpush1.msra.mxu0 0.0
  %79 = vmatprep.subr.mxu0 0.0
  %80 = vmatpush1.msra.mxu0 0.0
  %81 = vmatprep.subr.mxu0 0.0
  %82 = vmatpush1.msra.mxu0 0.0
  %83 = vmatprep.subr.mxu0 0.0
  %84 = vmatpush1.msra.mxu0 0.0
  %85 = vmatprep.subr.mxu0 0.0
  %86 = vmatpush1.msra.mxu0 0.0
  %87 = vmatprep.subr.mxu0 0.0
  %88 = vmatpush1.msra.mxu0 0.0
  %89 = vmatprep.subr.mxu0 0.0
  %90 = vmatpush1.msra.mxu0 0.0
  %91 = vmatprep.subr.mxu0 0.0
  %92 = vmatpush1.msra.mxu0 0.0
  %93 = vmatprep.subr.mxu0 0.0
  %94 = vmatpush1.msra.mxu0 0.0
  %95 = vmatprep.mubr.f32.mxu0 0.0
  %96 = vmatmul.mubr.f32.gmra.mrb[0].mxu0 %v29
  %v97 = vpop.f32.mrb[0].mxu0
  %v98 = vadd.f32 0.0, %v97
  %v99 = vpop.f32.mrb[0].mxu0
  %100 = vdwg.mxu0
  %v101 = vadd.f32 %v22, %v98
  %vm102 = vcmask 7168
  %103 = vst.msk [vmem:[#allocation2] sm:$0xff] %vm102, %v101
  // Predicated region
  $region18: #{tpu_custom_call.1} parent=0 // pred_check
    %p104 = pneg %p15
  $region19: #{tpu_custom_call.1} parent=0 // pred_check_branch
    %106 = sbr.rel (%p104) target = $region21
  $region20: #{tpu_custom_call.1} parent=0 // pred_region
    %v107 = vld [vmem:[#allocation2] sm:$0xff]
    %s108 = sld [smem:[#allocation3]]
    %v109 = vstv %s108
    %v110 = vadd.f32 %v107, %v109
    %111 = vst.msk [vmem:[%s3] sm:$0xff] %vm102, %v110
  $region21: #{tpu_custom_call.1} parent=0 // pred_fallthru
    _
  // Predicated region
  $region22: #{tpu_custom_call.1} parent=0 // pred_check
    _
  $region23: #{tpu_custom_call.1} parent=0 // pred_check_branch
    %113 = sbr.rel (0) target = $region25
  $region24: #{tpu_custom_call.1} parent=0 // pred_region
    _
  $region25: #{tpu_custom_call.1} parent=0 // pred_fallthru
    _
  // Predicated region
  $region26: #{tpu_custom_call.1} parent=0 // pred_check
    _
  $region27: #{tpu_custom_call.1} parent=0 // pred_check_branch
    %115 = sbr.rel (0) target = $region29
  $region28: #{tpu_custom_call.1} parent=0 // pred_region
    _
  $region29: #{tpu_custom_call.1} parent=0 // pred_fallthru
    _

</llo_original>
